<compile_context>
chip_gen: v5e
topology: v5e:2x2
jax: 0.10.0
libtpu: 0.0.40
codegen_flags: <defaults>
</compile_context>

<pallas_src>
import functools

import jax
import jax.numpy as jnp
from jax.experimental import pallas as pl
from jax.experimental.pallas import tpu as pltpu

_SUBLANE = 16          # safe batch-tile rounding for both f32 (8) and bf16 (16) layouts
_MIN_TILES = 4         # aim for >= 4 grid steps (pipelining + both v7x TensorCores)
_MAX_BLOCK_BATCH = 2048


def _round_up(n, m):
    return pl.cdiv(n, m) * m


def _vmem_budget_bytes():
    """Generation-aware scoped-VMEM cap (conservative default if the query fails)."""
    try:
        physical = pltpu.get_tpu_info().vmem_capacity_bytes
    except Exception:                       # query unavailable -> assume v7x-sized VMEM
        physical = 64 * 2**20
    if physical <= 64 * 2**20:              # v7x: 64 MiB physical per TensorCore
        return 48 * 2**20
    return 100 * 2**20                      # v5e / v6e: 128 MiB physical


def mlp_encoder_kernel(x_ref, w1_ref, b1_ref, w2_ref, b2_ref, w3_ref, b3_ref, o_ref):
    mxu_dtype = w1_ref.dtype

    # Cast activations for the MXU in-kernel (no wrapper-side padded bf16 copy of x).
    x = x_ref[...].astype(mxu_dtype)

    # Layer 1: Linear + ReLU.  MXU matmul (bf16 x bf16 -> f32 accumulate); bias + ReLU
    # stay f32 (v5e VPU has no bf16); re-cast to bf16 only to feed the next MXU matmul.
    y1 = jnp.dot(x, w1_ref[...], preferred_element_type=jnp.float32) + b1_ref[...]
    y1 = jnp.maximum(y1, 0.0).astype(mxu_dtype)

    # Layer 2: Linear + ReLU.
    y2 = jnp.dot(y1, w2_ref[...], preferred_element_type=jnp.float32) + b2_ref[...]
    y2 = jnp.maximum(y2, 0.0).astype(mxu_dtype)

    # Layer 3: Linear + ReLU.
    y3 = jnp.dot(y2, w3_ref[...], preferred_element_type=jnp.float32) + b3_ref[...]
    o_ref[...] = jnp.maximum(y3, 0.0).astype(o_ref.dtype)


def prepare_mlp_encoder_params(w1, b1, w2, b2, w3, b3, *, mxu_dtype=jnp.bfloat16):
    """One-time weight prep (bf16 cast + bias reshape) -- keeps it off the per-call path.

    Weights are expected pre-transposed to (in_features, out_features) for x @ W.
    """
    prep_w = lambda w: w.astype(mxu_dtype)
    prep_b = lambda b: b.astype(jnp.float32).reshape(1, -1)
    return (prep_w(w1), prep_b(b1), prep_w(w2), prep_b(b2), prep_w(w3), prep_b(b3))


def _choose_block_batch(B, requested):
    if requested is None:
        if B <= _MIN_TILES * _SUBLANE:
            return B                         # tiny batch: one full-array block
        bb = pl.cdiv(B, _MIN_TILES)          # aim for >= _MIN_TILES grid steps
    else:
        bb = requested
    bb = min(bb, _MAX_BLOCK_BATCH, B)
    return max(_SUBLANE, _round_up(bb, _SUBLANE))


def _mlp_encoder_impl(x, params, block_batch, out_dtype):
    w1, b1, w2, b2, w3, b3 = params
    B, in_size = x.shape
    hidden = w1.shape[1]
    out_dtype = x.dtype if out_dtype is None else out_dtype

    x_bytes = jnp.dtype(x.dtype).itemsize
    mxu_bytes = jnp.dtype(w1.dtype).itemsize
    out_bytes = jnp.dtype(out_dtype).itemsize

    bb = _choose_block_batch(B, block_batch)
    vmem_cap = _vmem_budget_bytes()

    # Fully resident (double-buffered) weights + biases; guard instead of silently failing.
    weight_bytes = (in_size * hidden + 2 * hidden * hidden) * mxu_bytes + 3 * hidden * 4
    if 2 * weight_bytes > 0.6 * vmem_cap:
        # TODO(synk): hidden-dim (K/N) tiled variant with an f32 accumulator scratch for
        # very large hidden sizes; not needed for TFN-scale encoders.
        raise NotImplementedError(
            f"hidden={hidden} too large for fully-resident weights "
            f"({2 * weight_bytes} B > 60% of {vmem_cap} B VMEM budget)")

    def step_bytes(b):
        io = 2 * b * in_size * x_bytes + 2 * b * hidden * out_bytes  # double-buffered tiles
        interm = b * (in_size * mxu_bytes + hidden * (4 + mxu_bytes) * 2 + hidden * 4)
        return io + interm + 2 * weight_bytes

    # Shrink the batch tile until the conservative per-step estimate fits the budget (v7x).
    while bb > _SUBLANE and 2 * step_bytes(bb) > vmem_cap:
        bb = max(_SUBLANE, _round_up(bb // 2, _SUBLANE))

    grid = (pl.cdiv(B, bb),)
    vmem_limit = int(min(max(2 * step_bytes(bb), 32 * 2**20), vmem_cap))

    # Advisory cost estimate so XLA can schedule around the custom call.
    flops = 2 * B * (in_size * hidden + 2 * hidden * hidden)
    bytes_accessed = x.size * x_bytes + weight_bytes + B * hidden * out_bytes
    cost = pl.CostEstimate(flops=flops, transcendentals=0, bytes_accessed=bytes_accessed)

    const = lambda shape: pl.BlockSpec(shape, lambda i: (0, 0))  # resident weights/biases

    return pl.pallas_call(
        mlp_encoder_kernel,
        out_shape=jax.ShapeDtypeStruct((B, hidden), out_dtype),
        grid_spec=pltpu.PrefetchScalarGridSpec(
            num_scalar_prefetch=0,
            grid=grid,
            in_specs=[
                pl.BlockSpec((bb, in_size), lambda i: (i, 0)),   # x: batch-tiled, unpadded
                const((in_size, hidden)), const((1, hidden)),    # layer 1
                const((hidden, hidden)), const((1, hidden)),     # layer 2
                const((hidden, hidden)), const((1, hidden)),     # layer 3
            ],
            out_specs=pl.BlockSpec((bb, hidden), lambda i: (i, 0)),
        ),
        compiler_params=pltpu.CompilerParams(
            dimension_semantics=("parallel",),
            vmem_limit_bytes=vmem_limit,
        ),
        cost_estimate=cost,
    )(x, w1, b1, w2, b2, w3, b3)


@functools.partial(jax.jit, static_argnames=("block_batch", "out_dtype"))
def mlp_encoder(x, params, *, block_batch=None, out_dtype=None):
    """Fused 3-layer MLP encoder (eval-mode MLPEncoder forward).

    x:      (B, in_size), streamed unpadded; cast to bf16 in-kernel for the MXU.
    params: output of prepare_mlp_encoder_params.
    out_dtype: defaults to x.dtype; pass jnp.bfloat16 to halve output HBM traffic if
               downstream consumers accept it.
    """
    return _mlp_encoder_impl(x, params, block_batch, out_dtype)


def _init_linear(key, in_features, out_features, dtype=jnp.float32):
    """Deterministic init mimicking torch.nn.Linear defaults (W stored transposed)."""
    kw, kb = jax.random.split(key)
    bound = 1.0 / (in_features ** 0.5)
    w = jax.random.uniform(kw, (in_features, out_features), dtype, -bound, bound)
    b = jax.random.uniform(kb, (out_features,), dtype, -bound, bound)
    return w, b


if __name__ == "__main__":
    batch, in_size, hidden = 8, 16, 32
    dropout_p = 0.2  # identity at inference; kept for signature parity

    root = jax.random.PRNGKey(0)
    kx, k1, k2, k3 = jax.random.split(root, 4)

    x = jax.random.normal(kx, (batch, in_size), jnp.float32)
    w1, b1 = _init_linear(k1, in_size, hidden)
    w2, b2 = _init_linear(k2, hidden, hidden)
    w3, b3 = _init_linear(k3, hidden, hidden)

    params = prepare_mlp_encoder_params(w1, b1, w2, b2, w3, b3)

    out = mlp_encoder(x, params)
    out = jax.block_until_ready(out)
    assert out.shape == (batch, hidden)
    assert out.dtype == x.dtype

    # Reference 1: same bf16-MXU / f32-accumulate recipe as the kernel (tight tol).
    def ref_bf16(xx, wbs):
        h = xx
        for w, b in wbs:
            y = jnp.dot(h.astype(jnp.bfloat16), w.astype(jnp.bfloat16),
                        preferred_element_type=jnp.float32) + b.astype(jnp.float32)
            h = jnp.maximum(y, 0.0)
        return h

    wbs = [(w1, b1), (w2, b2), (w3, b3)]
    ref1 = ref_bf16(x, wbs)
    assert jnp.allclose(out, ref1, atol=2e-3, rtol=2e-3)

    # Reference 2: pure-f32 forward (what the PyTorch module computes in eval mode).
    relu = lambda t: jnp.maximum(t, 0.0)
    ref2 = relu(relu(relu(x @ w1 + b1) @ w2 + b2) @ w3 + b3)
    assert jnp.allclose(out, ref2, atol=5e-2, rtol=5e-2)

    # Also exercise a multi-step grid (batch tiling with a partial last block).
    big_batch = 100
    xb = jax.random.normal(kx, (big_batch, in_size), jnp.float32)
    out_b = jax.block_until_ready(mlp_encoder(xb, params))
    assert out_b.shape == (big_batch, hidden)
    assert jnp.allclose(out_b, ref_bf16(xb, wbs), atol=2e-3, rtol=2e-3)

    print("KERNEL_OK")
</pallas_src>

<mosaic_0001>
module attributes {stable_mosaic.version = 11 : i64} {
  func.func @mlp_encoder_kernel(%arg0: i32, %arg1: memref<8x16xf32, #tpu.memory_space<vmem>>, %arg2: memref<16x32xbf16, #tpu.memory_space<vmem>>, %arg3: memref<1x32xf32, #tpu.memory_space<vmem>>, %arg4: memref<32x32xbf16, #tpu.memory_space<vmem>>, %arg5: memref<1x32xf32, #tpu.memory_space<vmem>>, %arg6: memref<32x32xbf16, #tpu.memory_space<vmem>>, %arg7: memref<1x32xf32, #tpu.memory_space<vmem>>, %arg8: memref<8x32xf32, #tpu.memory_space<vmem>>) attributes {dimension_semantics = [#tpu.dimension_semantics<parallel>], iteration_bounds = array<i64: 1>, scalar_prefetch = 0 : i64, scratch_operands = 0 : i64, tpu.core_type = #tpu.core_type<tc>, window_params = [{transform_indices = @transform_0, window_bounds = array<i64: 8, 16>}, {pipeline_mode = #tpu.pipeline_mode<synchronous>, transform_indices = @transform_1, window_bounds = array<i64: 16, 32>}, {pipeline_mode = #tpu.pipeline_mode<synchronous>, transform_indices = @transform_2, window_bounds = array<i64: 1, 32>}, {pipeline_mode = #tpu.pipeline_mode<synchronous>, transform_indices = @transform_3, window_bounds = array<i64: 32, 32>}, {pipeline_mode = #tpu.pipeline_mode<synchronous>, transform_indices = @transform_4, window_bounds = array<i64: 1, 32>}, {pipeline_mode = #tpu.pipeline_mode<synchronous>, transform_indices = @transform_5, window_bounds = array<i64: 32, 32>}, {pipeline_mode = #tpu.pipeline_mode<synchronous>, transform_indices = @transform_6, window_bounds = array<i64: 1, 32>}, {transform_indices = @transform_7, window_bounds = array<i64: 8, 32>}]} {
    %c0 = arith.constant 0 : index
    %c0_0 = arith.constant 0 : index
    %0 = vector.load %arg1[%c0, %c0_0] : memref<8x16xf32, #tpu.memory_space<vmem>>, vector<8x16xf32>
    %1 = arith.truncf %0 : vector<8x16xf32> to vector<8x16xbf16>
    %c0_1 = arith.constant 0 : index
    %c0_2 = arith.constant 0 : index
    %2 = vector.load %arg2[%c0_1, %c0_2] : memref<16x32xbf16, #tpu.memory_space<vmem>>, vector<16x32xbf16>
    %cst = arith.constant dense<0.000000e+00> : vector<8x32xf32>
    %3 = tpu.matmul %1, %2, %cst {dimension_numbers = #tpu.dot_dimension_numbers<[1], [0], [0], [1], [0, 0, 1, 1], [], []>} : vector<8x16xbf16>, vector<16x32xbf16>, vector<8x32xf32> -> vector<8x32xf32>
    %c0_3 = arith.constant 0 : index
    %c0_4 = arith.constant 0 : index
    %4 = vector.load %arg3[%c0_3, %c0_4] : memref<1x32xf32, #tpu.memory_space<vmem>>, vector<1x32xf32>
    %5 = vector.broadcast %4 : vector<1x32xf32> to vector<8x32xf32>
    %6 = arith.addf %3, %5 : vector<8x32xf32>
    %cst_5 = arith.constant 0.000000e+00 : f32
    %7 = vector.broadcast %cst_5 : f32 to vector<8x32xf32>
    %8 = arith.maximumf %6, %7 : vector<8x32xf32>
    %9 = arith.truncf %8 : vector<8x32xf32> to vector<8x32xbf16>
    %c0_6 = arith.constant 0 : index
    %c0_7 = arith.constant 0 : index
    %10 = vector.load %arg4[%c0_6, %c0_7] : memref<32x32xbf16, #tpu.memory_space<vmem>>, vector<32x32xbf16>
    %cst_8 = arith.constant dense<0.000000e+00> : vector<8x32xf32>
    %11 = tpu.matmul %9, %10, %cst_8 {dimension_numbers = #tpu.dot_dimension_numbers<[1], [0], [0], [1], [0, 0, 1, 1], [], []>} : vector<8x32xbf16>, vector<32x32xbf16>, vector<8x32xf32> -> vector<8x32xf32>
    %c0_9 = arith.constant 0 : index
    %c0_10 = arith.constant 0 : index
    %12 = vector.load %arg5[%c0_9, %c0_10] : memref<1x32xf32, #tpu.memory_space<vmem>>, vector<1x32xf32>
    %13 = vector.broadcast %12 : vector<1x32xf32> to vector<8x32xf32>
    %14 = arith.addf %11, %13 : vector<8x32xf32>
    %cst_11 = arith.constant 0.000000e+00 : f32
    %15 = vector.broadcast %cst_11 : f32 to vector<8x32xf32>
    %16 = arith.maximumf %14, %15 : vector<8x32xf32>
    %17 = arith.truncf %16 : vector<8x32xf32> to vector<8x32xbf16>
    %c0_12 = arith.constant 0 : index
    %c0_13 = arith.constant 0 : index
    %18 = vector.load %arg6[%c0_12, %c0_13] : memref<32x32xbf16, #tpu.memory_space<vmem>>, vector<32x32xbf16>
    %cst_14 = arith.constant dense<0.000000e+00> : vector<8x32xf32>
    %19 = tpu.matmul %17, %18, %cst_14 {dimension_numbers = #tpu.dot_dimension_numbers<[1], [0], [0], [1], [0, 0, 1, 1], [], []>} : vector<8x32xbf16>, vector<32x32xbf16>, vector<8x32xf32> -> vector<8x32xf32>
    %c0_15 = arith.constant 0 : index
    %c0_16 = arith.constant 0 : index
    %20 = vector.load %arg7[%c0_15, %c0_16] : memref<1x32xf32, #tpu.memory_space<vmem>>, vector<1x32xf32>
    %21 = vector.broadcast %20 : vector<1x32xf32> to vector<8x32xf32>
    %22 = arith.addf %19, %21 : vector<8x32xf32>
    %cst_17 = arith.constant 0.000000e+00 : f32
    %23 = vector.broadcast %cst_17 : f32 to vector<8x32xf32>
    %24 = arith.maximumf %22, %23 : vector<8x32xf32>
    %c0_18 = arith.constant 0 : index
    %c0_19 = arith.constant 0 : index
    %25 = vector.load %arg8[%c0_18, %c0_19] : memref<8x32xf32, #tpu.memory_space<vmem>>, vector<8x32xf32>
    tpu.vector_store %arg8[%c0_18, %c0_19], %24 {strides = array<i32>} : memref<8x32xf32, #tpu.memory_space<vmem>>, vector<8x32xf32>,
    return
  }
  func.func @transform_0(%arg0: i32) -> (i32, i32) {
    %c0_i32 = arith.constant 0 : i32
    %c0_i32_0 = arith.constant 0 : i32
    return %arg0, %c0_i32 : i32, i32
  }
  func.func @transform_1(%arg0: i32) -> (i32, i32) {
    %c0_i32 = arith.constant 0 : i32
    %c0_i32_0 = arith.constant 0 : i32
    %c0_i32_1 = arith.constant 0 : i32
    return %c0_i32, %c0_i32_0 : i32, i32
  }
  func.func @transform_2(%arg0: i32) -> (i32, i32) {
    %c0_i32 = arith.constant 0 : i32
    %c0_i32_0 = arith.constant 0 : i32
    %c0_i32_1 = arith.constant 0 : i32
    return %c0_i32, %c0_i32_0 : i32, i32
  }
  func.func @transform_3(%arg0: i32) -> (i32, i32) {
    %c0_i32 = arith.constant 0 : i32
    %c0_i32_0 = arith.constant 0 : i32
    %c0_i32_1 = arith.constant 0 : i32
    return %c0_i32, %c0_i32_0 : i32, i32
  }
  func.func @transform_4(%arg0: i32) -> (i32, i32) {
    %c0_i32 = arith.constant 0 : i32
    %c0_i32_0 = arith.constant 0 : i32
    %c0_i32_1 = arith.constant 0 : i32
    return %c0_i32, %c0_i32_0 : i32, i32
  }
  func.func @transform_5(%arg0: i32) -> (i32, i32) {
    %c0_i32 = arith.constant 0 : i32
    %c0_i32_0 = arith.constant 0 : i32
    %c0_i32_1 = arith.constant 0 : i32
    return %c0_i32, %c0_i32_0 : i32, i32
  }
  func.func @transform_6(%arg0: i32) -> (i32, i32) {
    %c0_i32 = arith.constant 0 : i32
    %c0_i32_0 = arith.constant 0 : i32
    %c0_i32_1 = arith.constant 0 : i32
    return %c0_i32, %c0_i32_0 : i32, i32
  }
  func.func @transform_7(%arg0: i32) -> (i32, i32) {
    %c0_i32 = arith.constant 0 : i32
    %c0_i32_0 = arith.constant 0 : i32
    return %arg0, %c0_i32 : i32, i32
  }
}

</mosaic_0001>

<llo_original>
// kernel: mlp_encoder.1
$region0: #{mlp_encoder.1}
  #allocation0 [shape = 'u32[]', space=smem, size = 0x4, offset = 0x4, fixed_abs, tag = 'smem constant byte address 0x4 - core index']
  #allocation1 [shape = 'u32[72,128]{1,0:T(1,128)}', space=vmem, size = 0x9000, scoped, tag = 'internal scratch']
  %s0 = inlined_call_operand.hbm [shape: f32[8,16], index: 0, kind: input, shape index: {}]
  %s1 = inlined_call_operand.hbm [shape: bf16[16,32], index: 1, kind: input, shape index: {}]
  %s2 = inlined_call_operand.vmem [shape: f32[1,32], index: 2, kind: input, shape index: {}]
  %s3 = inlined_call_operand.hbm [shape: bf16[32,32], index: 3, kind: input, shape index: {}]
  %s4 = inlined_call_operand.vmem [shape: f32[1,32], index: 4, kind: input, shape index: {}]
  %s5 = inlined_call_operand.hbm [shape: bf16[32,32], index: 5, kind: input, shape index: {}]
  %s6 = inlined_call_operand.vmem [shape: f32[1,32], index: 6, kind: input, shape index: {}]
  %s7 = inlined_call_operand.hbm [shape: f32[8,32], index: 7, kind: output, shape index: {}]
  %s8 = sld [smem:[#allocation0]]
  $region54: #{mlp_encoder.1} parent=0
    _
  %s10 = ssub.s32 1, %s8
  %s11 = scalar_select 0, %s10, %s8
  $region1: #{mlp_encoder.1} parent=0
    #allocation2 [shape = 'u8[4096]{0}', space=vmem, size = 0x1000, scoped, tag = 'input window, operand 0, single buffered']
    #allocation3 [shape = 's32[1]{0}', space=sflag, size = 0x4, scoped, tag = 'scoped memory for mlp_encoder.1']
    #allocation4 [shape = 's32[1]{0}', space=sflag, size = 0x4, scoped, tag = 'scoped memory for mlp_encoder.1']
    #allocation5 [shape = 'u8[4096]{0}', space=vmem, size = 0x1000, scoped, tag = 'input window, operand 1, single buffered']
    #allocation6 [shape = 's32[1]{0}', space=sflag, size = 0x4, scoped, tag = 'scoped memory for mlp_encoder.1']
    #allocation7 [shape = 'u8[8192]{0}', space=vmem, size = 0x2000, scoped, tag = 'input window, operand 3, single buffered']
    #allocation8 [shape = 'u8[8192]{0}', space=vmem, size = 0x2000, scoped, tag = 'input window, operand 5, single buffered']
    #allocation9 [shape = 's32[1]{0}', space=sflag, size = 0x4, scoped, tag = 'scoped memory for mlp_encoder.1']
    #allocation10 [shape = 'u8[4096]{0}', space=vmem, size = 0x1000, scoped, tag = 'output window, operand 0, single buffered']
    %12 = vsyncpa [#allocation3], 0
    %13 = vsyncpa [#allocation6], 0
    %14 = vsyncpa [#allocation9], 0
    %15 = vsyncpa [#allocation4], 0
    // Predicated region
    $region2: #{mlp_encoder.1} parent=1 // pred_check
      _
    $region3: #{mlp_encoder.1} parent=1 // pred_check_branch
      %17 = sbr.rel (0) target = $region5
    $region4: #{mlp_encoder.1} parent=1 // pred_region
      %19 = vsyncadd [#allocation3], 0
      %s21 = sshll.u32 %s0, 4
      %s22 = int_to_ptr.hbm [resolvable:$true] %s21
      %s23 = sshll.u32 [#allocation2], 4
      %s24 = int_to_ptr.vmem [resolvable:$true] %s23
      %26 = dma.hbm_to_vmem [thread:$0]  %s22, 128, %s24, [#allocation3]
    $region5: #{mlp_encoder.1} parent=1 // pred_fallthru
      _
    // Predicated region
    $region6: #{mlp_encoder.1} parent=1 // pred_check
      _
    $region7: #{mlp_encoder.1} parent=1 // pred_check_branch
      %28 = sbr.rel (0) target = $region9
    $region8: #{mlp_encoder.1} parent=1 // pred_region
      %30 = vsyncadd [#allocation6], 0
      %s31 = sshll.u32 %s1, 4
      %s32 = int_to_ptr.hbm [resolvable:$true] %s31
      %s33 = sshll.u32 [#allocation5], 4
      %s34 = int_to_ptr.vmem [resolvable:$true] %s33
      %39 = dma.hbm_to_vmem [thread:$0]  %s32, 128, %s34, [#allocation6], 64, 64, 4
    $region9: #{mlp_encoder.1} parent=1 // pred_fallthru
      _
    // Predicated region
    $region10: #{mlp_encoder.1} parent=1 // pred_check
      _
    $region11: #{mlp_encoder.1} parent=1 // pred_check_branch
      %41 = sbr.rel (0) target = $region13
    $region12: #{mlp_encoder.1} parent=1 // pred_region
      _
    $region13: #{mlp_encoder.1} parent=1 // pred_fallthru
      _
    // Predicated region
    $region14: #{mlp_encoder.1} parent=1 // pred_check
      _
    $region15: #{mlp_encoder.1} parent=1 // pred_check_branch
      %43 = sbr.rel (0) target = $region17
    $region16: #{mlp_encoder.1} parent=1 // pred_region
      %45 = vsyncadd [#allocation6], 0
      %s46 = sshll.u32 %s3, 4
      %s47 = int_to_ptr.hbm [resolvable:$true] %s46
      %s48 = sshll.u32 [#allocation7], 4
      %s49 = int_to_ptr.vmem [resolvable:$true] %s48
      %54 = dma.hbm_to_vmem [thread:$0]  %s47, 256, %s49, [#allocation6], 64, 64, 4
    $region17: #{mlp_encoder.1} parent=1 // pred_fallthru
      _
    // Predicated region
    $region18: #{mlp_encoder.1} parent=1 // pred_check
      _
    $region19: #{mlp_encoder.1} parent=1 // pred_check_branch
      %56 = sbr.rel (0) target = $region21
    $region20: #{mlp_encoder.1} parent=1 // pred_region
      _
    $region21: #{mlp_encoder.1} parent=1 // pred_fallthru
      _
    // Predicated region
    $region22: #{mlp_encoder.1} parent=1 // pred_check
      _
    $region23: #{mlp_encoder.1} parent=1 // pred_check_branch
      %58 = sbr.rel (0) target = $region25
    $region24: #{mlp_encoder.1} parent=1 // pred_region
      %60 = vsyncadd [#allocation9], 0
      %s61 = sshll.u32 %s5, 4
      %s62 = int_to_ptr.hbm [resolvable:$true] %s61
      %s63 = sshll.u32 [#allocation8], 4
      %s64 = int_to_ptr.vmem [resolvable:$true] %s63
      %69 = dma.hbm_to_vmem [thread:$0]  %s62, 256, %s64, [#allocation9], 64, 64, 4
    $region25: #{mlp_encoder.1} parent=1 // pred_fallthru
      _
    // Predicated region
    $region26: #{mlp_encoder.1} parent=1 // pred_check
      _
    $region27: #{mlp_encoder.1} parent=1 // pred_check_branch
      %71 = sbr.rel (0) target = $region29
    $region28: #{mlp_encoder.1} parent=1 // pred_region
      _
    $region29: #{mlp_encoder.1} parent=1 // pred_fallthru
      _
    // Predicated region
    $region30: #{mlp_encoder.1} parent=1 // pred_check
      _
    $region31: #{mlp_encoder.1} parent=1 // pred_check_branch
      %73 = sbr.rel (0) target = $region33
    $region32: #{mlp_encoder.1} parent=1 // pred_region
      %75 = dma.done [#allocation3], 128
    $region33: #{mlp_encoder.1} parent=1 // pred_fallthru
      _
    // Predicated region
    $region34: #{mlp_encoder.1} parent=1 // pred_check
      _
    $region35: #{mlp_encoder.1} parent=1 // pred_check_branch
      %77 = sbr.rel (0) target = $region37
    $region36: #{mlp_encoder.1} parent=1 // pred_region
      %79 = dma.done [#allocation6], 128
    $region37: #{mlp_encoder.1} parent=1 // pred_fallthru
      _
    // Predicated region
    $region38: #{mlp_encoder.1} parent=1 // pred_check
      _
    $region39: #{mlp_encoder.1} parent=1 // pred_check_branch
      %81 = sbr.rel (0) target = $region41
    $region40: #{mlp_encoder.1} parent=1 // pred_region
      %83 = dma.done [#allocation6], 256
    $region41: #{mlp_encoder.1} parent=1 // pred_fallthru
      _
    // Predicated region
    $region42: #{mlp_encoder.1} parent=1 // pred_check
      _
    $region43: #{mlp_encoder.1} parent=1 // pred_check_branch
      %85 = sbr.rel (0) target = $region45
    $region44: #{mlp_encoder.1} parent=1 // pred_region
      %87 = dma.done [#allocation9], 256
    $region45: #{mlp_encoder.1} parent=1 // pred_fallthru
      _
    %v89 = vld [vmem:[#allocation2] sm:$0xff]
    %v90 = vpack.c.bf16 %v89, %v89
    %v91 = vld [vmem:[#allocation5] sm:$0xf]
    %v92 = vld [vmem:[#allocation5 + $0x4] sm:$0xf]
    %v93 = vld [vmem:[%s2] sm:$0x1]
    %v95 = vperm.slane %v93, 0
    %v99 = vunpack.c.l.b16 %v91
    %v100 = vunpack.c.l.b16 %v92
    %v101 = vpack.c.b16 %v100, %v99
    %vm103 = vcmask 130048
    %v105 = vsel %vm103, %v90, 0
    %107 = vmatpush.bf16.msra.mxu0 0
    %108 = vmatpush.bf16.msra.mxu0 0
    %109 = vmatpush.bf16.msra.mxu0 0
    %110 = vmatpush.bf16.msra.mxu0 0
    %111 = vmatpush.bf16.msra.mxu0 0
    %112 = vmatpush.bf16.msra.mxu0 0
    %113 = vmatpush.bf16.msra.mxu0 0
    %114 = vmatpush.bf16.msra.mxu0 %v101
    %115 = vmatmul.bf16.gmra.mxu0 %v105
    %v116 = vpop.f32.mrf.mxu0
    %v117 = vadd.f32 %v95, %v116
    %v118 = vpop.f32.mrf.mxu0
    %119 = vdwg.mxu0
    %v120 = vmax.f32 %v117, 0.0
    %v121 = vpack.c.bf16 %v120, %v120
    %v122 = vld [vmem:[#allocation7] sm:$0xf]
    %v123 = vld [vmem:[#allocation7 + $0x4] sm:$0xf]
    %v124 = vld [vmem:[#allocation7 + $0x8] sm:$0xf]
    %v125 = vld [vmem:[#allocation7 + $0xc] sm:$0xf]
    %v126 = vld [vmem:[%s4] sm:$0x1]
    %v128 = vperm.slane %v126, 0
    %v134 = vunpack.c.l.b16 %v122
    %v135 = vunpack.c.l.b16 %v123
    %v136 = vunpack.c.l.b16 %v124
    %v137 = vunpack.c.l.b16 %v125
    %v138 = vpack.c.b16 %v135, %v134
    %v139 = vpack.c.b16 %v137, %v136
    %vm142 = vcmask 261120
    %v144 = vsel %vm142, %v121, 0
    %146 = vmatpush.bf16.msra.mxu0 0
    %147 = vmatpush.bf16.msra.mxu0 0
    %148 = vmatpush.bf16.msra.mxu0 0
    %149 = vmatpush.bf16.msra.mxu0 0
    %150 = vmatpush.bf16.msra.mxu0 0
    %151 = vmatpush.bf16.msra.mxu0 0
    %152 = vmatpush.bf16.msra.mxu0 %v139
    %153 = vmatpush.bf16.msra.mxu0 %v138
    %154 = vmatmul.bf16.gmra.mxu0 %v144
    %v155 = vpop.f32.mrf.mxu0
    %v156 = vadd.f32 %v128, %v155
    %v157 = vpop.f32.mrf.mxu0
    %158 = vdwg.mxu0
    %v159 = vmax.f32 %v156, 0.0
    %v160 = vpack.c.bf16 %v159, %v159
    %v161 = vld [vmem:[#allocation8] sm:$0xf]
    %v162 = vld [vmem:[#allocation8 + $0x4] sm:$0xf]
    %v163 = vld [vmem:[#allocation8 + $0x8] sm:$0xf]
    %v164 = vld [vmem:[#allocation8 + $0xc] sm:$0xf]
    %v165 = vld [vmem:[%s6] sm:$0x1]
    %v167 = vperm.slane %v165, 0
    %v173 = vunpack.c.l.b16 %v161
    %v174 = vunpack.c.l.b16 %v162
    %v175 = vunpack.c.l.b16 %v163
    %v176 = vunpack.c.l.b16 %v164
    %v177 = vpack.c.b16 %v174, %v173
    %v178 = vpack.c.b16 %v176, %v175
    %v182 = vsel %vm142, %v160, 0
    %184 = vmatpush.bf16.msra.mxu0 0
    %185 = vmatpush.bf16.msra.mxu0 0
    %186 = vmatpush.bf16.msra.mxu0 0
    %187 = vmatpush.bf16.msra.mxu0 0
    %188 = vmatpush.bf16.msra.mxu0 0
    %189 = vmatpush.bf16.msra.mxu0 0
    %190 = vmatpush.bf16.msra.mxu0 %v178
    %191 = vmatpush.bf16.msra.mxu0 %v177
    %192 = vmatmul.bf16.gmra.mxu0 %v182
    %v193 = vpop.f32.mrf.mxu0
    %v194 = vadd.f32 %v167, %v193
    %v195 = vpop.f32.mrf.mxu0
    %196 = vdwg.mxu0
    %v197 = vmax.f32 %v194, 0.0
    %198 = vst.msk [vmem:[#allocation10] sm:$0xff] %vm142, %v197
    // Predicated region
    $region46: #{mlp_encoder.1} parent=1 // pred_check
      _
    $region47: #{mlp_encoder.1} parent=1 // pred_check_branch
      %200 = sbr.rel (0) target = $region49
    $region48: #{mlp_encoder.1} parent=1 // pred_region
      %202 = vsyncadd [#allocation4], 0
      %s204 = sshll.u32 [#allocation10], 4
      %s205 = int_to_ptr.vmem [resolvable:$true] %s204
      %s206 = sshll.u32 %s7, 4
      %s207 = int_to_ptr.hbm [resolvable:$true] %s206
      %209 = dma.vmem_to_hbm [thread:$0]  %s205, 128, %s207, [#allocation4]
    $region49: #{mlp_encoder.1} parent=1 // pred_fallthru
      _
    // Predicated region
    $region50: #{mlp_encoder.1} parent=1 // pred_check
      _
    $region51: #{mlp_encoder.1} parent=1 // pred_check_branch
      %211 = sbr.rel (0) target = $region53
    $region52: #{mlp_encoder.1} parent=1 // pred_region
      %213 = dma.done [#allocation4], 128
    $region53: #{mlp_encoder.1} parent=1 // pred_fallthru
      _
    %214 = vsyncpa [#allocation3], 1
    %215 = vsyncpa [#allocation6], 1
    %216 = vsyncpa [#allocation9], 1
    %217 = vsyncpa [#allocation4], 1

</llo_original>
